<compile_context>
chip_gen: v6e
topology: v6e:2x2x1
jax: 0.10.0
libtpu: 0.0.40
codegen_flags: <defaults>
</compile_context>

<pallas_src>
import functools
import math

import jax
import jax.numpy as jnp
from jax.experimental import pallas as pl
from jax.experimental.pallas import tpu as pltpu


# ---------------------------------------------------------------------------
# Static pooling geometry (bug-compatible with the PyTorch module).
# ---------------------------------------------------------------------------
def _level_params(H, W, s):
    """Replicates the PyTorch kernel/stride/padding arithmetic exactly."""
    h_wid = int(math.ceil(H / s))
    w_wid = int(math.ceil(W / s))
    h_pad = int((h_wid * s - H + 1) / 2)
    w_pad = int((w_wid * s - W + 1) / 2)
    oh = (H + 2 * h_pad - h_wid) // h_wid + 1   # MaxPool2d output (floor mode)
    ow = (W + 2 * w_pad - w_wid) // w_wid + 1
    return h_wid, w_wid, h_pad, w_pad, oh, ow


def _build_levels(H, W, out_pool_size):
    """Static window boundaries for every pyramid level (clipped to valid)."""
    levels = []
    for s in out_pool_size:
        h_wid, w_wid, h_pad, w_pad, oh, ow = _level_params(H, W, s)
        rows, cols = [], []
        for i in range(oh):
            hs = max(i * h_wid - h_pad, 0)
            he = min(i * h_wid - h_pad + h_wid, H)
            assert he > hs, f"empty pooling window (level s={s}, row {i})"
            rows.append((hs, he))
        for j in range(ow):
            ws = max(j * w_wid - w_pad, 0)
            we = min(j * w_wid - w_pad + w_wid, W)
            assert we > ws, f"empty pooling window (level s={s}, col {j})"
            cols.append((ws, we))
        levels.append(dict(s=s, oh=oh, ow=ow, rows=rows, cols=cols))

    offsets, off = [], 0
    for lvl in levels:
        offsets.append(off)
        off += lvl["oh"] * lvl["ow"]
    return levels, offsets, off  # (levels, per-level bin offset, total_bins)


def _nest_indices(coarse, fine):
    """Indices of `fine` windows exactly tiling `coarse`, else None (static)."""
    cs, ce = coarse
    idxs = [k for k, (s, e) in enumerate(fine) if s >= cs and e <= ce]
    if not idxs:
        return None
    covered = sum(fine[k][1] - fine[k][0] for k in idxs)
    if (min(fine[k][0] for k in idxs) == cs
            and max(fine[k][1] for k in idxs) == ce
            and covered == ce - cs):
        return idxs
    return None


def _ceil_to(x, m):
    return ((x + m - 1) // m) * m


# ---------------------------------------------------------------------------
# Kernel
# ---------------------------------------------------------------------------
def _make_spp_kernel(levels, offsets, base_idx, W):
    base = levels[base_idx]
    base_off = offsets[base_idx]
    ow_b = base["ow"]

    def kernel(x_ref, o_ref, xt_ref):
        # x_ref : (cb, H*W)        -- channels on sublanes, flat spatial on lanes
        # o_ref : (total_bins, cb) -- lane-dense pooled output for this block
        # xt_ref: (H*W, cb)        -- scratch: spatial on sublanes, channels on lanes
        CB = x_ref.shape[0]
        HW = x_ref.shape[1]

        # In-kernel relayout: transpose the tile into the scratch in aligned
        # (<=256 sublane x 128 lane) chunks so the compiler streams it (small
        # live values) instead of materializing the whole tile as one value.
        RC, LC = 256, 128
        for r0 in range(0, CB, RC):
            r1 = min(r0 + RC, CB)
            for l0 in range(0, HW, LC):
                l1 = min(l0 + LC, HW)
                xt_ref[l0:l1, r0:r1] = jnp.transpose(x_ref[r0:r1, l0:l1], (1, 0))

        def band_max(rw):
            """Elementwise (VPU) max over the spatial rows of a row window -> (W, cb)."""
            hs, he = rw
            acc = xt_ref[hs * W:(hs + 1) * W, :]
            for h in range(hs + 1, he):
                acc = jnp.maximum(acc, xt_ref[h * W:(h + 1) * W, :])
            return acc

        def col_max(band, cw):
            ws, we = cw
            return jnp.max(band[ws:we, :], axis=0, keepdims=True)   # (1, cb)

        # ---- finest (base) level: computed once, stored, then reused --------
        for i, rw in enumerate(base["rows"]):
            band = band_max(rw)                     # one row band, shared by all cols
            for j, cw in enumerate(base["cols"]):
                idx = base_off + i * ow_b + j
                o_ref[idx:idx + 1, :] = col_max(band, cw).astype(o_ref.dtype)

        # ---- remaining levels: reuse base bins when windows nest exactly ----
        for lidx, (lvl, off) in enumerate(zip(levels, offsets)):
            if lidx == base_idx:
                continue
            ow = lvl["ow"]
            for i, rw in enumerate(lvl["rows"]):
                ri = _nest_indices(rw, base["rows"])
                band = None
                for j, cw in enumerate(lvl["cols"]):
                    ci = _nest_indices(cw, base["cols"]) if ri is not None else None
                    if ri is not None and ci is not None:
                        # Max over nested base bins, read back from the output
                        # tile (VMEM) -> bounded vreg live ranges.
                        val = functools.reduce(
                            jnp.maximum,
                            [o_ref[base_off + bi * ow_b + bj:
                                   base_off + bi * ow_b + bj + 1, :]
                             for bi in ri for bj in ci])
                    else:
                        if band is None:
                            band = band_max(rw)     # direct fallback (any geometry)
                        val = col_max(band, cw)
                    idx = off + i * ow + j
                    o_ref[idx:idx + 1, :] = val.astype(o_ref.dtype)

    return kernel


# ---------------------------------------------------------------------------
# Block / VMEM sizing
# ---------------------------------------------------------------------------
def _vmem_capacity_bytes():
    try:
        return int(pltpu.get_tpu_info().vmem_capacity_bytes)
    except Exception:
        return 64 << 20        # conservative default (v7x per-TensorCore VMEM)


def _choose_channel_block(NC, HW, itemsize, block_budget, target_block_bytes):
    lanes = _ceil_to(HW, 128)

    def vmem_need(cb):
        in_buf = cb * lanes * itemsize                             # one pipeline buffer
        xt_buf = _ceil_to(HW, 8) * _ceil_to(cb, 128) * itemsize    # transposed scratch
        return 2 * in_buf + xt_buf

    if NC < 256 or NC % 128 != 0:
        # Single full-extent block: always legal, no padding copy needed.
        # TODO(synk): a very large, non-multiple-of-128 NC would need a
        # clamped-tail grid; realistic SPP inputs have NC % 128 == 0.
        return NC

    # NC >= 256 and a multiple of 128: split into >= 2 blocks so the
    # "parallel" grid can be sharded across the two v7x TensorCores, picking
    # the largest multiple-of-128 divisor under the byte / VMEM targets.
    best = 128
    cb = 128
    while cb <= NC // 2:
        if (NC % cb == 0
                and cb * HW * itemsize <= target_block_bytes
                and vmem_need(cb) <= block_budget):
            best = cb
        cb += 128
    return best


# ---------------------------------------------------------------------------
# Wrapper
# ---------------------------------------------------------------------------
def spatial_pyramid_pool(x, out_pool_size, *, use_pallas=None, interpret=False):
    """Pallas implementation of Spatial_Pyramid_Pool.forward.

    x: (N, C, H, W). Returns (N, C * sum(oh_i * ow_i)) with the same feature
    ordering as the PyTorch module (per level: (C, oh, ow)-major, levels
    concatenated in the order of `out_pool_size`).
    """
    N, C, H, W = x.shape
    NC, HW = N * C, H * W

    if use_pallas is None:
        # Tiny-input fast path: below ~1 sublane tile of channels (or a few KB
        # of activation) the pallas_call fixed cost dominates on every TPU
        # generation; use the fused XLA path there.
        use_pallas = NC >= 8 and (NC >= 128 or NC * HW >= (1 << 16))
    if not use_pallas:
        return _reference_spp(x, out_pool_size)

    levels, offsets, total_bins = _build_levels(H, W, out_pool_size)
    base_idx = max(range(len(levels)),
                   key=lambda k: levels[k]["oh"] * levels[k]["ow"])

    itemsize = jnp.dtype(x.dtype).itemsize
    phys = _vmem_capacity_bytes()
    block_budget = min(int(phys * 0.6), 48 << 20)        # v7x (64 MiB) aware
    target_block = min(16 << 20, block_budget // 3)      # ~2*in + scratch fits budget
    cb = _choose_channel_block(NC, HW, itemsize, block_budget, target_block)
    grid = NC // cb

    # Free view of the NCHW activation: channels on sublanes, spatial on lanes.
    # Each grid block = `cb` consecutive channels = one contiguous HBM region.
    x2 = x.reshape(NC, HW)

    kernel = _make_spp_kernel(levels, offsets, base_idx, W)

    in_vmem = cb * _ceil_to(HW, 128) * itemsize
    xt_vmem = _ceil_to(HW, 8) * _ceil_to(cb, 128) * itemsize
    out_vmem = _ceil_to(total_bins, 8) * _ceil_to(cb, 128) * itemsize
    vmem_limit = int(min(max(2 * (in_vmem + out_vmem) + xt_vmem + (2 << 20), 8 << 20),
                         int(phys * 0.85)))

    call_kwargs = {}
    if not interpret:
        call_kwargs["compiler_params"] = pltpu.CompilerParams(
            dimension_semantics=("parallel",),
            vmem_limit_bytes=vmem_limit,
        )

    pooled = pl.pallas_call(
        kernel,
        grid=(grid,),
        in_specs=[pl.BlockSpec((cb, HW), lambda g: (g, 0))],
        out_specs=pl.BlockSpec((total_bins, cb), lambda g: (0, g)),
        out_shape=jax.ShapeDtypeStruct((total_bins, NC), x.dtype),
        scratch_shapes=[pltpu.VMEM((HW, cb), x.dtype)],
        interpret=interpret,
        **call_kwargs,
    )(x2)

    # Cheap glue on the tiny pooled slab (total_bins * N * C elements) to
    # restore PyTorch's per-level (C, oh, ow)-major flatten + concat ordering.
    pieces = []
    for lvl, off in zip(levels, offsets):
        oh, ow = lvl["oh"], lvl["ow"]
        slab = pooled[off:off + oh * ow].reshape(oh, ow, N, C)
        pieces.append(jnp.transpose(slab, (2, 3, 0, 1)).reshape(N, C * oh * ow))
    return jnp.concatenate(pieces, axis=1)


# ---------------------------------------------------------------------------
# Plain-JAX reference (PyTorch semantics); also used as the tiny-input path.
# ---------------------------------------------------------------------------
def _reference_spp(x, out_pool_size):
    N, C, H, W = x.shape
    pieces = []
    for s in out_pool_size:
        h_wid, w_wid, h_pad, w_pad, oh, ow = _level_params(H, W, s)
        pooled = jnp.full((N, C, oh, ow), -jnp.inf, dtype=x.dtype)
        for i in range(oh):
            hs = max(i * h_wid - h_pad, 0)
            he = min(i * h_wid - h_pad + h_wid, H)
            for j in range(ow):
                ws = max(j * w_wid - w_pad, 0)
                we = min(j * w_wid - w_pad + w_wid, W)
                pooled = pooled.at[:, :, i, j].set(
                    jnp.max(x[:, :, hs:he, ws:we], axis=(2, 3)))
        pieces.append(pooled.reshape(N, -1))
    return jnp.concatenate(pieces, axis=1)


if __name__ == "__main__":
    out_pool_size = [1, 2, 4]   # Spatial_Pyramid_Pool has no learnable params.

    # 1) Requested small config, forced through the compiled Pallas path
    #    (NC = 8, H*W = 256; nested pyramid -> base-bin reuse path).
    x1 = jax.random.normal(jax.random.PRNGKey(0), (2, 4, 16, 16), dtype=jnp.float32)
    o1 = jax.block_until_ready(spatial_pyramid_pool(x1, out_pool_size, use_pallas=True))
    r1 = _reference_spp(x1, out_pool_size)
    assert o1.shape == (2, 4 * sum(s * s for s in out_pool_size)), o1.shape
    assert jnp.allclose(o1, r1, atol=1e-6), "mismatch vs reference (config 1)"

    # 2) Lane-dense config with a 2-step channel grid (NC = 256 -> cb = 128):
    #    exercises contiguous block DMA, BlockSpec pipelining and the v7x
    #    two-TensorCore "parallel" split.
    x2 = jax.random.normal(jax.random.PRNGKey(1), (4, 64, 16, 16), dtype=jnp.float32)
    o2 = jax.block_until_ready(spatial_pyramid_pool(x2, out_pool_size))
    r2 = _reference_spp(x2, out_pool_size)
    assert o2.shape == r2.shape and jnp.allclose(o2, r2, atol=1e-6), "config 2"

    # 3) Padded, non-nesting pyramid (the 3x3 level does not tile the 4x4 base)
    #    on the compiled path -> exercises the direct window fallback.
    o3 = jax.block_until_ready(spatial_pyramid_pool(x1, [1, 2, 3, 4], use_pallas=True))
    r3 = _reference_spp(x1, [1, 2, 3, 4])
    assert o3.shape == r3.shape and jnp.allclose(o3, r3, atol=1e-6), "config 3"

    # 4) Degenerate channel count -> tiny-input XLA fast path dispatch.
    x4 = jax.random.normal(jax.random.PRNGKey(2), (2, 3, 13, 13), dtype=jnp.float32)
    o4 = jax.block_until_ready(spatial_pyramid_pool(x4, [1, 2, 3]))
    r4 = _reference_spp(x4, [1, 2, 3])
    assert o4.shape == r4.shape and jnp.allclose(o4, r4, atol=1e-6), "config 4"

    # 5) Odd H*W (13*13 = 169) with padded / non-nesting windows: validate the
    #    same kernel code path via the Pallas interpreter, keeping the compiled
    #    test matrix on shapes whose in-kernel transposes are native tiles.
    x5 = jax.random.normal(jax.random.PRNGKey(3), (2, 8, 13, 13), dtype=jnp.float32)
    o5 = jax.block_until_ready(
        spatial_pyramid_pool(x5, [1, 2, 3], use_pallas=True, interpret=True))
    r5 = _reference_spp(x5, [1, 2, 3])
    assert o5.shape == r5.shape and jnp.allclose(o5, r5, atol=1e-6), "config 5"

    print("KERNEL_OK")
</pallas_src>

<mosaic_0001>
module attributes {stable_mosaic.version = 11 : i64} {
  func.func @kernel(%arg0: i32, %arg1: memref<8x256xf32, #tpu.memory_space<vmem>>, %arg2: memref<21x8xf32, #tpu.memory_space<vmem>>, %arg3: memref<256x8xf32, #tpu.memory_space<vmem>>) attributes {dimension_semantics = [#tpu.dimension_semantics<parallel>], iteration_bounds = array<i64: 1>, scalar_prefetch = 0 : i64, scratch_operands = 1 : i64, tpu.core_type = #tpu.core_type<tc>, window_params = [{transform_indices = @transform_0, window_bounds = array<i64: 8, 256>}, {transform_indices = @transform_1, window_bounds = array<i64: 21, 8>}]} {
    %c0 = arith.constant 0 : index
    %c0_0 = arith.constant 0 : index
    %0 = vector.load %arg1[%c0, %c0_0] : memref<8x256xf32, #tpu.memory_space<vmem>>, vector<8x128xf32>
    %1 = tpu.transpose %0, [1, 0] : vector<8x128xf32> -> vector<128x8xf32>
    %c0_1 = arith.constant 0 : index
    %c0_2 = arith.constant 0 : index
    %2 = vector.load %arg3[%c0_1, %c0_2] : memref<256x8xf32, #tpu.memory_space<vmem>>, vector<128x8xf32>
    tpu.vector_store %arg3[%c0_1, %c0_2], %1 {strides = array<i32>} : memref<256x8xf32, #tpu.memory_space<vmem>>, vector<128x8xf32>,
    %c0_3 = arith.constant 0 : index
    %c128 = arith.constant 128 : index
    %3 = vector.load %arg1[%c0_3, %c128] : memref<8x256xf32, #tpu.memory_space<vmem>>, vector<8x128xf32>
    %4 = tpu.transpose %3, [1, 0] : vector<8x128xf32> -> vector<128x8xf32>
    %c128_4 = arith.constant 128 : index
    %c0_5 = arith.constant 0 : index
    %5 = vector.load %arg3[%c128_4, %c0_5] : memref<256x8xf32, #tpu.memory_space<vmem>>, vector<128x8xf32>
    tpu.vector_store %arg3[%c128_4, %c0_5], %4 {strides = array<i32>} : memref<256x8xf32, #tpu.memory_space<vmem>>, vector<128x8xf32>,
    %c0_6 = arith.constant 0 : index
    %c0_7 = arith.constant 0 : index
    %6 = vector.load %arg3[%c0_6, %c0_7] : memref<256x8xf32, #tpu.memory_space<vmem>>, vector<16x8xf32>
    %c16 = arith.constant 16 : index
    %c0_8 = arith.constant 0 : index
    %7 = vector.load %arg3[%c16, %c0_8] : memref<256x8xf32, #tpu.memory_space<vmem>>, vector<16x8xf32>
    %8 = arith.maximumf %6, %7 : vector<16x8xf32>
    %c32 = arith.constant 32 : index
    %c0_9 = arith.constant 0 : index
    %9 = vector.load %arg3[%c32, %c0_9] : memref<256x8xf32, #tpu.memory_space<vmem>>, vector<16x8xf32>
    %10 = arith.maximumf %8, %9 : vector<16x8xf32>
    %c48 = arith.constant 48 : index
    %c0_10 = arith.constant 0 : index
    %11 = vector.load %arg3[%c48, %c0_10] : memref<256x8xf32, #tpu.memory_space<vmem>>, vector<16x8xf32>
    %12 = arith.maximumf %10, %11 : vector<16x8xf32>
    %13 = vector.extract_strided_slice %12 {offsets = [0, 0], sizes = [4, 8], strides = [1, 1]} : vector<16x8xf32> to vector<4x8xf32>
    %cst = arith.constant dense<0xFF800000> : vector<8xf32>
    %14 = vector.multi_reduction <maximumf>, %13, %cst [0] : vector<4x8xf32> to vector<8xf32>
    %15 = vector.shape_cast %14 : vector<8xf32> to vector<1x8xf32>
    %c5 = arith.constant 5 : index
    %c0_11 = arith.constant 0 : index
    %16 = vector.load %arg2[%c5, %c0_11] : memref<21x8xf32, #tpu.memory_space<vmem>>, vector<1x8xf32>
    tpu.vector_store %arg2[%c5, %c0_11], %15 {strides = array<i32>} : memref<21x8xf32, #tpu.memory_space<vmem>>, vector<1x8xf32>,
    %17 = vector.extract_strided_slice %12 {offsets = [4, 0], sizes = [4, 8], strides = [1, 1]} : vector<16x8xf32> to vector<4x8xf32>
    %cst_12 = arith.constant dense<0xFF800000> : vector<8xf32>
    %18 = vector.multi_reduction <maximumf>, %17, %cst_12 [0] : vector<4x8xf32> to vector<8xf32>
    %19 = vector.shape_cast %18 : vector<8xf32> to vector<1x8xf32>
    %c6 = arith.constant 6 : index
    %c0_13 = arith.constant 0 : index
    %20 = vector.load %arg2[%c6, %c0_13] : memref<21x8xf32, #tpu.memory_space<vmem>>, vector<1x8xf32>
    tpu.vector_store %arg2[%c6, %c0_13], %19 {strides = array<i32>} : memref<21x8xf32, #tpu.memory_space<vmem>>, vector<1x8xf32>,
    %21 = vector.extract_strided_slice %12 {offsets = [8, 0], sizes = [4, 8], strides = [1, 1]} : vector<16x8xf32> to vector<4x8xf32>
    %cst_14 = arith.constant dense<0xFF800000> : vector<8xf32>
    %22 = vector.multi_reduction <maximumf>, %21, %cst_14 [0] : vector<4x8xf32> to vector<8xf32>
    %23 = vector.shape_cast %22 : vector<8xf32> to vector<1x8xf32>
    %c7 = arith.constant 7 : index
    %c0_15 = arith.constant 0 : index
    %24 = vector.load %arg2[%c7, %c0_15] : memref<21x8xf32, #tpu.memory_space<vmem>>, vector<1x8xf32>
    tpu.vector_store %arg2[%c7, %c0_15], %23 {strides = array<i32>} : memref<21x8xf32, #tpu.memory_space<vmem>>, vector<1x8xf32>,
    %25 = vector.extract_strided_slice %12 {offsets = [12, 0], sizes = [4, 8], strides = [1, 1]} : vector<16x8xf32> to vector<4x8xf32>
    %cst_16 = arith.constant dense<0xFF800000> : vector<8xf32>
    %26 = vector.multi_reduction <maximumf>, %25, %cst_16 [0] : vector<4x8xf32> to vector<8xf32>
    %27 = vector.shape_cast %26 : vector<8xf32> to vector<1x8xf32>
    %c8 = arith.constant 8 : index
    %c0_17 = arith.constant 0 : index
    %28 = vector.load %arg2[%c8, %c0_17] : memref<21x8xf32, #tpu.memory_space<vmem>>, vector<1x8xf32>
    tpu.vector_store %arg2[%c8, %c0_17], %27 {strides = array<i32>} : memref<21x8xf32, #tpu.memory_space<vmem>>, vector<1x8xf32>,
    %c64 = arith.constant 64 : index
    %c0_18 = arith.constant 0 : index
    %29 = vector.load %arg3[%c64, %c0_18] : memref<256x8xf32, #tpu.memory_space<vmem>>, vector<16x8xf32>
    %c80 = arith.constant 80 : index
    %c0_19 = arith.constant 0 : index
    %30 = vector.load %arg3[%c80, %c0_19] : memref<256x8xf32, #tpu.memory_space<vmem>>, vector<16x8xf32>
    %31 = arith.maximumf %29, %30 : vector<16x8xf32>
    %c96 = arith.constant 96 : index
    %c0_20 = arith.constant 0 : index
    %32 = vector.load %arg3[%c96, %c0_20] : memref<256x8xf32, #tpu.memory_space<vmem>>, vector<16x8xf32>
    %33 = arith.maximumf %31, %32 : vector<16x8xf32>
    %c112 = arith.constant 112 : index
    %c0_21 = arith.constant 0 : index
    %34 = vector.load %arg3[%c112, %c0_21] : memref<256x8xf32, #tpu.memory_space<vmem>>, vector<16x8xf32>
    %35 = arith.maximumf %33, %34 : vector<16x8xf32>
    %36 = vector.extract_strided_slice %35 {offsets = [0, 0], sizes = [4, 8], strides = [1, 1]} : vector<16x8xf32> to vector<4x8xf32>
    %cst_22 = arith.constant dense<0xFF800000> : vector<8xf32>
    %37 = vector.multi_reduction <maximumf>, %36, %cst_22 [0] : vector<4x8xf32> to vector<8xf32>
    %38 = vector.shape_cast %37 : vector<8xf32> to vector<1x8xf32>
    %c9 = arith.constant 9 : index
    %c0_23 = arith.constant 0 : index
    %39 = vector.load %arg2[%c9, %c0_23] : memref<21x8xf32, #tpu.memory_space<vmem>>, vector<1x8xf32>
    tpu.vector_store %arg2[%c9, %c0_23], %38 {strides = array<i32>} : memref<21x8xf32, #tpu.memory_space<vmem>>, vector<1x8xf32>,
    %40 = vector.extract_strided_slice %35 {offsets = [4, 0], sizes = [4, 8], strides = [1, 1]} : vector<16x8xf32> to vector<4x8xf32>
    %cst_24 = arith.constant dense<0xFF800000> : vector<8xf32>
    %41 = vector.multi_reduction <maximumf>, %40, %cst_24 [0] : vector<4x8xf32> to vector<8xf32>
    %42 = vector.shape_cast %41 : vector<8xf32> to vector<1x8xf32>
    %c10 = arith.constant 10 : index
    %c0_25 = arith.constant 0 : index
    %43 = vector.load %arg2[%c10, %c0_25] : memref<21x8xf32, #tpu.memory_space<vmem>>, vector<1x8xf32>
    tpu.vector_store %arg2[%c10, %c0_25], %42 {strides = array<i32>} : memref<21x8xf32, #tpu.memory_space<vmem>>, vector<1x8xf32>,
    %44 = vector.extract_strided_slice %35 {offsets = [8, 0], sizes = [4, 8], strides = [1, 1]} : vector<16x8xf32> to vector<4x8xf32>
    %cst_26 = arith.constant dense<0xFF800000> : vector<8xf32>
    %45 = vector.multi_reduction <maximumf>, %44, %cst_26 [0] : vector<4x8xf32> to vector<8xf32>
    %46 = vector.shape_cast %45 : vector<8xf32> to vector<1x8xf32>
    %c11 = arith.constant 11 : index
    %c0_27 = arith.constant 0 : index
    %47 = vector.load %arg2[%c11, %c0_27] : memref<21x8xf32, #tpu.memory_space<vmem>>, vector<1x8xf32>
    tpu.vector_store %arg2[%c11, %c0_27], %46 {strides = array<i32>} : memref<21x8xf32, #tpu.memory_space<vmem>>, vector<1x8xf32>,
    %48 = vector.extract_strided_slice %35 {offsets = [12, 0], sizes = [4, 8], strides = [1, 1]} : vector<16x8xf32> to vector<4x8xf32>
    %cst_28 = arith.constant dense<0xFF800000> : vector<8xf32>
    %49 = vector.multi_reduction <maximumf>, %48, %cst_28 [0] : vector<4x8xf32> to vector<8xf32>
    %50 = vector.shape_cast %49 : vector<8xf32> to vector<1x8xf32>
    %c12 = arith.constant 12 : index
    %c0_29 = arith.constant 0 : index
    %51 = vector.load %arg2[%c12, %c0_29] : memref<21x8xf32, #tpu.memory_space<vmem>>, vector<1x8xf32>
    tpu.vector_store %arg2[%c12, %c0_29], %50 {strides = array<i32>} : memref<21x8xf32, #tpu.memory_space<vmem>>, vector<1x8xf32>,
    %c128_30 = arith.constant 128 : index
    %c0_31 = arith.constant 0 : index
    %52 = vector.load %arg3[%c128_30, %c0_31] : memref<256x8xf32, #tpu.memory_space<vmem>>, vector<16x8xf32>
    %c144 = arith.constant 144 : index
    %c0_32 = arith.constant 0 : index
    %53 = vector.load %arg3[%c144, %c0_32] : memref<256x8xf32, #tpu.memory_space<vmem>>, vector<16x8xf32>
    %54 = arith.maximumf %52, %53 : vector<16x8xf32>
    %c160 = arith.constant 160 : index
    %c0_33 = arith.constant 0 : index
    %55 = vector.load %arg3[%c160, %c0_33] : memref<256x8xf32, #tpu.memory_space<vmem>>, vector<16x8xf32>
    %56 = arith.maximumf %54, %55 : vector<16x8xf32>
    %c176 = arith.constant 176 : index
    %c0_34 = arith.constant 0 : index
    %57 = vector.load %arg3[%c176, %c0_34] : memref<256x8xf32, #tpu.memory_space<vmem>>, vector<16x8xf32>
    %58 = arith.maximumf %56, %57 : vector<16x8xf32>
    %59 = vector.extract_strided_slice %58 {offsets = [0, 0], sizes = [4, 8], strides = [1, 1]} : vector<16x8xf32> to vector<4x8xf32>
    %cst_35 = arith.constant dense<0xFF800000> : vector<8xf32>
    %60 = vector.multi_reduction <maximumf>, %59, %cst_35 [0] : vector<4x8xf32> to vector<8xf32>
    %61 = vector.shape_cast %60 : vector<8xf32> to vector<1x8xf32>
    %c13 = arith.constant 13 : index
    %c0_36 = arith.constant 0 : index
    %62 = vector.load %arg2[%c13, %c0_36] : memref<21x8xf32, #tpu.memory_space<vmem>>, vector<1x8xf32>
    tpu.vector_store %arg2[%c13, %c0_36], %61 {strides = array<i32>} : memref<21x8xf32, #tpu.memory_space<vmem>>, vector<1x8xf32>,
    %63 = vector.extract_strided_slice %58 {offsets = [4, 0], sizes = [4, 8], strides = [1, 1]} : vector<16x8xf32> to vector<4x8xf32>
    %cst_37 = arith.constant dense<0xFF800000> : vector<8xf32>
    %64 = vector.multi_reduction <maximumf>, %63, %cst_37 [0] : vector<4x8xf32> to vector<8xf32>
    %65 = vector.shape_cast %64 : vector<8xf32> to vector<1x8xf32>
    %c14 = arith.constant 14 : index
    %c0_38 = arith.constant 0 : index
    %66 = vector.load %arg2[%c14, %c0_38] : memref<21x8xf32, #tpu.memory_space<vmem>>, vector<1x8xf32>
    tpu.vector_store %arg2[%c14, %c0_38], %65 {strides = array<i32>} : memref<21x8xf32, #tpu.memory_space<vmem>>, vector<1x8xf32>,
    %67 = vector.extract_strided_slice %58 {offsets = [8, 0], sizes = [4, 8], strides = [1, 1]} : vector<16x8xf32> to vector<4x8xf32>
    %cst_39 = arith.constant dense<0xFF800000> : vector<8xf32>
    %68 = vector.multi_reduction <maximumf>, %67, %cst_39 [0] : vector<4x8xf32> to vector<8xf32>
    %69 = vector.shape_cast %68 : vector<8xf32> to vector<1x8xf32>
    %c15 = arith.constant 15 : index
    %c0_40 = arith.constant 0 : index
    %70 = vector.load %arg2[%c15, %c0_40] : memref<21x8xf32, #tpu.memory_space<vmem>>, vector<1x8xf32>
    tpu.vector_store %arg2[%c15, %c0_40], %69 {strides = array<i32>} : memref<21x8xf32, #tpu.memory_space<vmem>>, vector<1x8xf32>,
    %71 = vector.extract_strided_slice %58 {offsets = [12, 0], sizes = [4, 8], strides = [1, 1]} : vector<16x8xf32> to vector<4x8xf32>
    %cst_41 = arith.constant dense<0xFF800000> : vector<8xf32>
    %72 = vector.multi_reduction <maximumf>, %71, %cst_41 [0] : vector<4x8xf32> to vector<8xf32>
    %73 = vector.shape_cast %72 : vector<8xf32> to vector<1x8xf32>
    %c16_42 = arith.constant 16 : index
    %c0_43 = arith.constant 0 : index
    %74 = vector.load %arg2[%c16_42, %c0_43] : memref<21x8xf32, #tpu.memory_space<vmem>>, vector<1x8xf32>
    tpu.vector_store %arg2[%c16_42, %c0_43], %73 {strides = array<i32>} : memref<21x8xf32, #tpu.memory_space<vmem>>, vector<1x8xf32>,
    %c192 = arith.constant 192 : index
    %c0_44 = arith.constant 0 : index
    %75 = vector.load %arg3[%c192, %c0_44] : memref<256x8xf32, #tpu.memory_space<vmem>>, vector<16x8xf32>
    %c208 = arith.constant 208 : index
    %c0_45 = arith.constant 0 : index
    %76 = vector.load %arg3[%c208, %c0_45] : memref<256x8xf32, #tpu.memory_space<vmem>>, vector<16x8xf32>
    %77 = arith.maximumf %75, %76 : vector<16x8xf32>
    %c224 = arith.constant 224 : index
    %c0_46 = arith.constant 0 : index
    %78 = vector.load %arg3[%c224, %c0_46] : memref<256x8xf32, #tpu.memory_space<vmem>>, vector<16x8xf32>
    %79 = arith.maximumf %77, %78 : vector<16x8xf32>
    %c240 = arith.constant 240 : index
    %c0_47 = arith.constant 0 : index
    %80 = vector.load %arg3[%c240, %c0_47] : memref<256x8xf32, #tpu.memory_space<vmem>>, vector<16x8xf32>
    %81 = arith.maximumf %79, %80 : vector<16x8xf32>
    %82 = vector.extract_strided_slice %81 {offsets = [0, 0], sizes = [4, 8], strides = [1, 1]} : vector<16x8xf32> to vector<4x8xf32>
    %cst_48 = arith.constant dense<0xFF800000> : vector<8xf32>
    %83 = vector.multi_reduction <maximumf>, %82, %cst_48 [0] : vector<4x8xf32> to vector<8xf32>
    %84 = vector.shape_cast %83 : vector<8xf32> to vector<1x8xf32>
    %c17 = arith.constant 17 : index
    %c0_49 = arith.constant 0 : index
    %85 = vector.load %arg2[%c17, %c0_49] : memref<21x8xf32, #tpu.memory_space<vmem>>, vector<1x8xf32>
    tpu.vector_store %arg2[%c17, %c0_49], %84 {strides = array<i32>} : memref<21x8xf32, #tpu.memory_space<vmem>>, vector<1x8xf32>,
    %86 = vector.extract_strided_slice %81 {offsets = [4, 0], sizes = [4, 8], strides = [1, 1]} : vector<16x8xf32> to vector<4x8xf32>
    %cst_50 = arith.constant dense<0xFF800000> : vector<8xf32>
    %87 = vector.multi_reduction <maximumf>, %86, %cst_50 [0] : vector<4x8xf32> to vector<8xf32>
    %88 = vector.shape_cast %87 : vector<8xf32> to vector<1x8xf32>
    %c18 = arith.constant 18 : index
    %c0_51 = arith.constant 0 : index
    %89 = vector.load %arg2[%c18, %c0_51] : memref<21x8xf32, #tpu.memory_space<vmem>>, vector<1x8xf32>
    tpu.vector_store %arg2[%c18, %c0_51], %88 {strides = array<i32>} : memref<21x8xf32, #tpu.memory_space<vmem>>, vector<1x8xf32>,
    %90 = vector.extract_strided_slice %81 {offsets = [8, 0], sizes = [4, 8], strides = [1, 1]} : vector<16x8xf32> to vector<4x8xf32>
    %cst_52 = arith.constant dense<0xFF800000> : vector<8xf32>
    %91 = vector.multi_reduction <maximumf>, %90, %cst_52 [0] : vector<4x8xf32> to vector<8xf32>
    %92 = vector.shape_cast %91 : vector<8xf32> to vector<1x8xf32>
    %c19 = arith.constant 19 : index
    %c0_53 = arith.constant 0 : index
    %93 = vector.load %arg2[%c19, %c0_53] : memref<21x8xf32, #tpu.memory_space<vmem>>, vector<1x8xf32>
    tpu.vector_store %arg2[%c19, %c0_53], %92 {strides = array<i32>} : memref<21x8xf32, #tpu.memory_space<vmem>>, vector<1x8xf32>,
    %94 = vector.extract_strided_slice %81 {offsets = [12, 0], sizes = [4, 8], strides = [1, 1]} : vector<16x8xf32> to vector<4x8xf32>
    %cst_54 = arith.constant dense<0xFF800000> : vector<8xf32>
    %95 = vector.multi_reduction <maximumf>, %94, %cst_54 [0] : vector<4x8xf32> to vector<8xf32>
    %96 = vector.shape_cast %95 : vector<8xf32> to vector<1x8xf32>
    %c20 = arith.constant 20 : index
    %c0_55 = arith.constant 0 : index
    %97 = vector.load %arg2[%c20, %c0_55] : memref<21x8xf32, #tpu.memory_space<vmem>>, vector<1x8xf32>
    tpu.vector_store %arg2[%c20, %c0_55], %96 {strides = array<i32>} : memref<21x8xf32, #tpu.memory_space<vmem>>, vector<1x8xf32>,
    %c5_56 = arith.constant 5 : index
    %c0_57 = arith.constant 0 : index
    %98 = vector.load %arg2[%c5_56, %c0_57] : memref<21x8xf32, #tpu.memory_space<vmem>>, vector<1x8xf32>
    %c6_58 = arith.constant 6 : index
    %c0_59 = arith.constant 0 : index
    %99 = vector.load %arg2[%c6_58, %c0_59] : memref<21x8xf32, #tpu.memory_space<vmem>>, vector<1x8xf32>
    %c7_60 = arith.constant 7 : index
    %c0_61 = arith.constant 0 : index
    %100 = vector.load %arg2[%c7_60, %c0_61] : memref<21x8xf32, #tpu.memory_space<vmem>>, vector<1x8xf32>
    %c8_62 = arith.constant 8 : index
    %c0_63 = arith.constant 0 : index
    %101 = vector.load %arg2[%c8_62, %c0_63] : memref<21x8xf32, #tpu.memory_space<vmem>>, vector<1x8xf32>
    %c9_64 = arith.constant 9 : index
    %c0_65 = arith.constant 0 : index
    %102 = vector.load %arg2[%c9_64, %c0_65] : memref<21x8xf32, #tpu.memory_space<vmem>>, vector<1x8xf32>
    %c10_66 = arith.constant 10 : index
    %c0_67 = arith.constant 0 : index
    %103 = vector.load %arg2[%c10_66, %c0_67] : memref<21x8xf32, #tpu.memory_space<vmem>>, vector<1x8xf32>
    %c11_68 = arith.constant 11 : index
    %c0_69 = arith.constant 0 : index
    %104 = vector.load %arg2[%c11_68, %c0_69] : memref<21x8xf32, #tpu.memory_space<vmem>>, vector<1x8xf32>
    %c12_70 = arith.constant 12 : index
    %c0_71 = arith.constant 0 : index
    %105 = vector.load %arg2[%c12_70, %c0_71] : memref<21x8xf32, #tpu.memory_space<vmem>>, vector<1x8xf32>
    %c13_72 = arith.constant 13 : index
    %c0_73 = arith.constant 0 : index
    %106 = vector.load %arg2[%c13_72, %c0_73] : memref<21x8xf32, #tpu.memory_space<vmem>>, vector<1x8xf32>
    %c14_74 = arith.constant 14 : index
    %c0_75 = arith.constant 0 : index
    %107 = vector.load %arg2[%c14_74, %c0_75] : memref<21x8xf32, #tpu.memory_space<vmem>>, vector<1x8xf32>
    %c15_76 = arith.constant 15 : index
    %c0_77 = arith.constant 0 : index
    %108 = vector.load %arg2[%c15_76, %c0_77] : memref<21x8xf32, #tpu.memory_space<vmem>>, vector<1x8xf32>
    %c16_78 = arith.constant 16 : index
    %c0_79 = arith.constant 0 : index
    %109 = vector.load %arg2[%c16_78, %c0_79] : memref<21x8xf32, #tpu.memory_space<vmem>>, vector<1x8xf32>
    %c17_80 = arith.constant 17 : index
    %c0_81 = arith.constant 0 : index
    %110 = vector.load %arg2[%c17_80, %c0_81] : memref<21x8xf32, #tpu.memory_space<vmem>>, vector<1x8xf32>
    %c18_82 = arith.constant 18 : index
    %c0_83 = arith.constant 0 : index
    %111 = vector.load %arg2[%c18_82, %c0_83] : memref<21x8xf32, #tpu.memory_space<vmem>>, vector<1x8xf32>
    %c19_84 = arith.constant 19 : index
    %c0_85 = arith.constant 0 : index
    %112 = vector.load %arg2[%c19_84, %c0_85] : memref<21x8xf32, #tpu.memory_space<vmem>>, vector<1x8xf32>
    %c20_86 = arith.constant 20 : index
    %c0_87 = arith.constant 0 : index
    %113 = vector.load %arg2[%c20_86, %c0_87] : memref<21x8xf32, #tpu.memory_space<vmem>>, vector<1x8xf32>
    %114 = arith.maximumf %98, %99 : vector<1x8xf32>
    %115 = arith.maximumf %114, %100 : vector<1x8xf32>
    %116 = arith.maximumf %115, %101 : vector<1x8xf32>
    %117 = arith.maximumf %116, %102 : vector<1x8xf32>
    %118 = arith.maximumf %117, %103 : vector<1x8xf32>
    %119 = arith.maximumf %118, %104 : vector<1x8xf32>
    %120 = arith.maximumf %119, %105 : vector<1x8xf32>
    %121 = arith.maximumf %120, %106 : vector<1x8xf32>
    %122 = arith.maximumf %121, %107 : vector<1x8xf32>
    %123 = arith.maximumf %122, %108 : vector<1x8xf32>
    %124 = arith.maximumf %123, %109 : vector<1x8xf32>
    %125 = arith.maximumf %124, %110 : vector<1x8xf32>
    %126 = arith.maximumf %125, %111 : vector<1x8xf32>
    %127 = arith.maximumf %126, %112 : vector<1x8xf32>
    %128 = arith.maximumf %127, %113 : vector<1x8xf32>
    %c0_88 = arith.constant 0 : index
    %c0_89 = arith.constant 0 : index
    %129 = vector.load %arg2[%c0_88, %c0_89] : memref<21x8xf32, #tpu.memory_space<vmem>>, vector<1x8xf32>
    tpu.vector_store %arg2[%c0_88, %c0_89], %128 {strides = array<i32>} : memref<21x8xf32, #tpu.memory_space<vmem>>, vector<1x8xf32>,
    %c5_90 = arith.constant 5 : index
    %c0_91 = arith.constant 0 : index
    %130 = vector.load %arg2[%c5_90, %c0_91] : memref<21x8xf32, #tpu.memory_space<vmem>>, vector<1x8xf32>
    %c6_92 = arith.constant 6 : index
    %c0_93 = arith.constant 0 : index
    %131 = vector.load %arg2[%c6_92, %c0_93] : memref<21x8xf32, #tpu.memory_space<vmem>>, vector<1x8xf32>
    %c9_94 = arith.constant 9 : index
    %c0_95 = arith.constant 0 : index
    %132 = vector.load %arg2[%c9_94, %c0_95] : memref<21x8xf32, #tpu.memory_space<vmem>>, vector<1x8xf32>
    %c10_96 = arith.constant 10 : index
    %c0_97 = arith.constant 0 : index
    %133 = vector.load %arg2[%c10_96, %c0_97] : memref<21x8xf32, #tpu.memory_space<vmem>>, vector<1x8xf32>
    %134 = arith.maximumf %130, %131 : vector<1x8xf32>
    %135 = arith.maximumf %134, %132 : vector<1x8xf32>
    %136 = arith.maximumf %135, %133 : vector<1x8xf32>
    %c1 = arith.constant 1 : index
    %c0_98 = arith.constant 0 : index
    %137 = vector.load %arg2[%c1, %c0_98] : memref<21x8xf32, #tpu.memory_space<vmem>>, vector<1x8xf32>
    tpu.vector_store %arg2[%c1, %c0_98], %136 {strides = array<i32>} : memref<21x8xf32, #tpu.memory_space<vmem>>, vector<1x8xf32>,
    %c7_99 = arith.constant 7 : index
    %c0_100 = arith.constant 0 : index
    %138 = vector.load %arg2[%c7_99, %c0_100] : memref<21x8xf32, #tpu.memory_space<vmem>>, vector<1x8xf32>
    %c8_101 = arith.constant 8 : index
    %c0_102 = arith.constant 0 : index
    %139 = vector.load %arg2[%c8_101, %c0_102] : memref<21x8xf32, #tpu.memory_space<vmem>>, vector<1x8xf32>
    %c11_103 = arith.constant 11 : index
    %c0_104 = arith.constant 0 : index
    %140 = vector.load %arg2[%c11_103, %c0_104] : memref<21x8xf32, #tpu.memory_space<vmem>>, vector<1x8xf32>
    %c12_105 = arith.constant 12 : index
    %c0_106 = arith.constant 0 : index
    %141 = vector.load %arg2[%c12_105, %c0_106] : memref<21x8xf32, #tpu.memory_space<vmem>>, vector<1x8xf32>
    %142 = arith.maximumf %138, %139 : vector<1x8xf32>
    %143 = arith.maximumf %142, %140 : vector<1x8xf32>
    %144 = arith.maximumf %143, %141 : vector<1x8xf32>
    %c2 = arith.constant 2 : index
    %c0_107 = arith.constant 0 : index
    %145 = vector.load %arg2[%c2, %c0_107] : memref<21x8xf32, #tpu.memory_space<vmem>>, vector<1x8xf32>
    tpu.vector_store %arg2[%c2, %c0_107], %144 {strides = array<i32>} : memref<21x8xf32, #tpu.memory_space<vmem>>, vector<1x8xf32>,
    %c13_108 = arith.constant 13 : index
    %c0_109 = arith.constant 0 : index
    %146 = vector.load %arg2[%c13_108, %c0_109] : memref<21x8xf32, #tpu.memory_space<vmem>>, vector<1x8xf32>
    %c14_110 = arith.constant 14 : index
    %c0_111 = arith.constant 0 : index
    %147 = vector.load %arg2[%c14_110, %c0_111] : memref<21x8xf32, #tpu.memory_space<vmem>>, vector<1x8xf32>
    %c17_112 = arith.constant 17 : index
    %c0_113 = arith.constant 0 : index
    %148 = vector.load %arg2[%c17_112, %c0_113] : memref<21x8xf32, #tpu.memory_space<vmem>>, vector<1x8xf32>
    %c18_114 = arith.constant 18 : index
    %c0_115 = arith.constant 0 : index
    %149 = vector.load %arg2[%c18_114, %c0_115] : memref<21x8xf32, #tpu.memory_space<vmem>>, vector<1x8xf32>
    %150 = arith.maximumf %146, %147 : vector<1x8xf32>
    %151 = arith.maximumf %150, %148 : vector<1x8xf32>
    %152 = arith.maximumf %151, %149 : vector<1x8xf32>
    %c3 = arith.constant 3 : index
    %c0_116 = arith.constant 0 : index
    %153 = vector.load %arg2[%c3, %c0_116] : memref<21x8xf32, #tpu.memory_space<vmem>>, vector<1x8xf32>
    tpu.vector_store %arg2[%c3, %c0_116], %152 {strides = array<i32>} : memref<21x8xf32, #tpu.memory_space<vmem>>, vector<1x8xf32>,
    %c15_117 = arith.constant 15 : index
    %c0_118 = arith.constant 0 : index
    %154 = vector.load %arg2[%c15_117, %c0_118] : memref<21x8xf32, #tpu.memory_space<vmem>>, vector<1x8xf32>
    %c16_119 = arith.constant 16 : index
    %c0_120 = arith.constant 0 : index
    %155 = vector.load %arg2[%c16_119, %c0_120] : memref<21x8xf32, #tpu.memory_space<vmem>>, vector<1x8xf32>
    %c19_121 = arith.constant 19 : index
    %c0_122 = arith.constant 0 : index
    %156 = vector.load %arg2[%c19_121, %c0_122] : memref<21x8xf32, #tpu.memory_space<vmem>>, vector<1x8xf32>
    %c20_123 = arith.constant 20 : index
    %c0_124 = arith.constant 0 : index
    %157 = vector.load %arg2[%c20_123, %c0_124] : memref<21x8xf32, #tpu.memory_space<vmem>>, vector<1x8xf32>
    %158 = arith.maximumf %154, %155 : vector<1x8xf32>
    %159 = arith.maximumf %158, %156 : vector<1x8xf32>
    %160 = arith.maximumf %159, %157 : vector<1x8xf32>
    %c4 = arith.constant 4 : index
    %c0_125 = arith.constant 0 : index
    %161 = vector.load %arg2[%c4, %c0_125] : memref<21x8xf32, #tpu.memory_space<vmem>>, vector<1x8xf32>
    tpu.vector_store %arg2[%c4, %c0_125], %160 {strides = array<i32>} : memref<21x8xf32, #tpu.memory_space<vmem>>, vector<1x8xf32>,
    return
  }
  func.func @transform_0(%arg0: i32) -> (i32, i32) {
    %c0_i32 = arith.constant 0 : i32
    %c0_i32_0 = arith.constant 0 : i32
    return %arg0, %c0_i32 : i32, i32
  }
  func.func @transform_1(%arg0: i32) -> (i32, i32) {
    %c0_i32 = arith.constant 0 : i32
    %c0_i32_0 = arith.constant 0 : i32
    return %c0_i32, %arg0 : i32, i32
  }
}

</mosaic_0001>

<llo_original>
// kernel: tpu_custom_call.1
$region0: #{tpu_custom_call.1}
  #allocation0 [shape = 'u32[]', space=smem, size = 0x4, offset = 0x4, fixed_abs, tag = 'smem constant byte address 0x4 - core index']
  #allocation1 [shape = 'u32[144,128]{1,0:T(1,128)}', space=vmem, size = 0x12000, scoped, tag = 'internal scratch']
  #allocation2 [shape = 'f32[256,8]{1,0:T(8,128)}', space=vmem, size = 0x20000, scoped, tag = 'scratch operand']
  %s0 = inlined_call_operand.hbm [shape: f32[8,256], index: 0, kind: input, shape index: {}]
  %s1 = inlined_call_operand.vmem [shape: f32[21,8], index: 1, kind: output, shape index: {}]
  %s2 = sld [smem:[#allocation0]]
  $region18: #{tpu_custom_call.1} parent=0
    _
  %s4 = ssub.s32 1, %s2
  %s5 = scalar_select 0, %s4, %s2
  $region1: #{tpu_custom_call.1} parent=0
    #allocation3 [shape = 'u8[8192]{0}', space=vmem, size = 0x2000, scoped, tag = 'input window, operand 0, single buffered']
    #allocation4 [shape = 's32[1]{0}', space=sflag, size = 0x4, scoped, tag = 'scoped memory for tpu_custom_call.1']
    %6 = vsyncpa [#allocation4], 0
    // Predicated region
    $region2: #{tpu_custom_call.1} parent=1 // pred_check
      _
    $region3: #{tpu_custom_call.1} parent=1 // pred_check_branch
      %8 = sbr.rel (0) target = $region5
    $region4: #{tpu_custom_call.1} parent=1 // pred_region
      %s10 = ssub.s32 256, 256
      %11 = vsyncadd [#allocation4], %s10
      %s13 = sshll.u32 [#allocation3], 4
      %s14 = int_to_ptr.vmem [resolvable:$true] %s13
      %16 = dma.hbm_to_vmem [thread:$0]  %s0, 256, %s14, [#allocation4]
    $region5: #{tpu_custom_call.1} parent=1 // pred_fallthru
      _
    // Predicated region
    $region6: #{tpu_custom_call.1} parent=1 // pred_check
      _
    $region7: #{tpu_custom_call.1} parent=1 // pred_check_branch
      %18 = sbr.rel (0) target = $region9
    $region8: #{tpu_custom_call.1} parent=1 // pred_region
      %19 = dma.done [#allocation4], 256
    $region9: #{tpu_custom_call.1} parent=1 // pred_fallthru
      _
    %v20 = vld [vmem:[#allocation3] sm:$0xff]
    %21 = vxpose.xlu0.b32.start [1/16] %v20, 128
    %22 = vxpose.xlu0.b32.cont [2/16] 0.0, 128
    %23 = vxpose.xlu0.b32.cont [3/16] 0.0, 128
    %24 = vxpose.xlu0.b32.cont [4/16] 0.0, 128
    %25 = vxpose.xlu0.b32.cont [5/16] 0.0, 128
    %26 = vxpose.xlu0.b32.cont [6/16] 0.0, 128
    %27 = vxpose.xlu0.b32.cont [7/16] 0.0, 128
    %28 = vxpose.xlu0.b32.cont [8/16] 0.0, 128
    %29 = vxpose.xlu0.b32.cont [9/16] 0.0, 128
    %30 = vxpose.xlu0.b32.cont [10/16] 0.0, 128
    %31 = vxpose.xlu0.b32.cont [11/16] 0.0, 128
    %32 = vxpose.xlu0.b32.cont [12/16] 0.0, 128
    %33 = vxpose.xlu0.b32.cont [13/16] 0.0, 128
    %34 = vxpose.xlu0.b32.cont [14/16] 0.0, 128
    %35 = vxpose.xlu0.b32.cont [15/16] 0.0, 128
    %36 = vxpose.xlu0.b32.end [16/16] 0.0, 128
    %v37 = vpop.trf.xlu0
    %v38 = vpop.trf.xlu0
    %v39 = vpop.trf.xlu0
    %v40 = vpop.trf.xlu0
    %v41 = vpop.trf.xlu0
    %v42 = vpop.trf.xlu0
    %v43 = vpop.trf.xlu0
    %v44 = vpop.trf.xlu0
    %v45 = vpop.trf.xlu0
    %v46 = vpop.trf.xlu0
    %v47 = vpop.trf.xlu0
    %v48 = vpop.trf.xlu0
    %v49 = vpop.trf.xlu0
    %v50 = vpop.trf.xlu0
    %v51 = vpop.trf.xlu0
    %v52 = vpop.trf.xlu0
    %vm53 = vcmask 64512
    %54 = vst.msk [vmem:[#allocation2] sm:$0xff] %vm53, %v37
    %55 = vst.msk [vmem:[#allocation2 + $0x8] sm:$0xff] %vm53, %v38
    %56 = vst.msk [vmem:[#allocation2 + $0x10] sm:$0xff] %vm53, %v39
    %57 = vst.msk [vmem:[#allocation2 + $0x18] sm:$0xff] %vm53, %v40
    %58 = vst.msk [vmem:[#allocation2 + $0x20] sm:$0xff] %vm53, %v41
    %59 = vst.msk [vmem:[#allocation2 + $0x28] sm:$0xff] %vm53, %v42
    %60 = vst.msk [vmem:[#allocation2 + $0x30] sm:$0xff] %vm53, %v43
    %61 = vst.msk [vmem:[#allocation2 + $0x38] sm:$0xff] %vm53, %v44
    %62 = vst.msk [vmem:[#allocation2 + $0x40] sm:$0xff] %vm53, %v45
    %63 = vst.msk [vmem:[#allocation2 + $0x48] sm:$0xff] %vm53, %v46
    %64 = vst.msk [vmem:[#allocation2 + $0x50] sm:$0xff] %vm53, %v47
    %65 = vst.msk [vmem:[#allocation2 + $0x58] sm:$0xff] %vm53, %v48
    %66 = vst.msk [vmem:[#allocation2 + $0x60] sm:$0xff] %vm53, %v49
    %67 = vst.msk [vmem:[#allocation2 + $0x68] sm:$0xff] %vm53, %v50
    %68 = vst.msk [vmem:[#allocation2 + $0x70] sm:$0xff] %vm53, %v51
    %69 = vst.msk [vmem:[#allocation2 + $0x78] sm:$0xff] %vm53, %v52
    %v70 = vld [vmem:[#allocation3 + $0x8] sm:$0xff]
    %71 = vxpose.xlu0.b32.start [1/16] %v70, 128
    %72 = vxpose.xlu0.b32.cont [2/16] 0.0, 128
    %73 = vxpose.xlu0.b32.cont [3/16] 0.0, 128
    %74 = vxpose.xlu0.b32.cont [4/16] 0.0, 128
    %75 = vxpose.xlu0.b32.cont [5/16] 0.0, 128
    %76 = vxpose.xlu0.b32.cont [6/16] 0.0, 128
    %77 = vxpose.xlu0.b32.cont [7/16] 0.0, 128
    %78 = vxpose.xlu0.b32.cont [8/16] 0.0, 128
    %79 = vxpose.xlu0.b32.cont [9/16] 0.0, 128
    %80 = vxpose.xlu0.b32.cont [10/16] 0.0, 128
    %81 = vxpose.xlu0.b32.cont [11/16] 0.0, 128
    %82 = vxpose.xlu0.b32.cont [12/16] 0.0, 128
    %83 = vxpose.xlu0.b32.cont [13/16] 0.0, 128
    %84 = vxpose.xlu0.b32.cont [14/16] 0.0, 128
    %85 = vxpose.xlu0.b32.cont [15/16] 0.0, 128
    %86 = vxpose.xlu0.b32.end [16/16] 0.0, 128
    %v87 = vpop.trf.xlu0
    %v88 = vpop.trf.xlu0
    %v89 = vpop.trf.xlu0
    %v90 = vpop.trf.xlu0
    %v91 = vpop.trf.xlu0
    %v92 = vpop.trf.xlu0
    %v93 = vpop.trf.xlu0
    %v94 = vpop.trf.xlu0
    %v95 = vpop.trf.xlu0
    %v96 = vpop.trf.xlu0
    %v97 = vpop.trf.xlu0
    %v98 = vpop.trf.xlu0
    %v99 = vpop.trf.xlu0
    %v100 = vpop.trf.xlu0
    %v101 = vpop.trf.xlu0
    %v102 = vpop.trf.xlu0
    %103 = vst.msk [vmem:[#allocation2 + $0x80] sm:$0xff] %vm53, %v87
    %104 = vst.msk [vmem:[#allocation2 + $0x88] sm:$0xff] %vm53, %v88
    %105 = vst.msk [vmem:[#allocation2 + $0x90] sm:$0xff] %vm53, %v89
    %106 = vst.msk [vmem:[#allocation2 + $0x98] sm:$0xff] %vm53, %v90
    %107 = vst.msk [vmem:[#allocation2 + $0xa0] sm:$0xff] %vm53, %v91
    %108 = vst.msk [vmem:[#allocation2 + $0xa8] sm:$0xff] %vm53, %v92
    %109 = vst.msk [vmem:[#allocation2 + $0xb0] sm:$0xff] %vm53, %v93
    %110 = vst.msk [vmem:[#allocation2 + $0xb8] sm:$0xff] %vm53, %v94
    %111 = vst.msk [vmem:[#allocation2 + $0xc0] sm:$0xff] %vm53, %v95
    %112 = vst.msk [vmem:[#allocation2 + $0xc8] sm:$0xff] %vm53, %v96
    %113 = vst.msk [vmem:[#allocation2 + $0xd0] sm:$0xff] %vm53, %v97
    %114 = vst.msk [vmem:[#allocation2 + $0xd8] sm:$0xff] %vm53, %v98
    %115 = vst.msk [vmem:[#allocation2 + $0xe0] sm:$0xff] %vm53, %v99
    %116 = vst.msk [vmem:[#allocation2 + $0xe8] sm:$0xff] %vm53, %v100
    %117 = vst.msk [vmem:[#allocation2 + $0xf0] sm:$0xff] %vm53, %v101
    %118 = vst.msk [vmem:[#allocation2 + $0xf8] sm:$0xff] %vm53, %v102
    %v119 = vld [vmem:[#allocation2] sm:$0xff]
    %v120 = vld [vmem:[#allocation2 + $0x8] sm:$0xff]
    %v121 = vld [vmem:[#allocation2 + $0x10] sm:$0xff]
    %v122 = vld [vmem:[#allocation2 + $0x18] sm:$0xff]
    %v123 = vmax.f32 %v119, %v121
    %v124 = vmax.f32 %v120, %v122
    %v125 = vld [vmem:[#allocation2 + $0x20] sm:$0xff]
    %v126 = vld [vmem:[#allocation2 + $0x28] sm:$0xff]
    %v127 = vmax.f32 %v123, %v125
    %v128 = vmax.f32 %v124, %v126
    %v129 = vld [vmem:[#allocation2 + $0x30] sm:$0xff]
    %v130 = vld [vmem:[#allocation2 + $0x38] sm:$0xff]
    %v131 = vmax.f32 %v127, %v129
    %v132 = vmax.f32 %v128, %v130
    %vm133 = vcmask 60416
    %v134 = vsel %vm133, %v131, -inf
    %v135 = vrot.slane %v134, 4
    %v136 = vmax.f32 %v134, %v135
    %v137 = vrot.slane %v136, 2
    %v138 = vmax.f32 %v136, %v137
    %v139 = vrot.slane %v138, 1
    %v140 = vmax.f32 %v138, %v139
    %vm141 = vcmask 57344
    %142 = vst.msk [vmem:[%s1 + $0x5] sm:$0x1] %vm141, %v140
    %vm143 = vcmask 64516
    %v144 = vsel %vm143, %v131, -inf
    %v145 = vrot.slane %v144, 4
    %v146 = vmax.f32 %v144, %v145
    %v147 = vrot.slane %v146, 2
    %v148 = vmax.f32 %v146, %v147
    %v149 = vrot.slane %v148, 1
    %v150 = vmax.f32 %v148, %v149
    %151 = vst.msk [vmem:[%s1 + $0x6] sm:$0x1] %vm141, %v150
    %v152 = vsel %vm133, %v132, -inf
    %v153 = vrot.slane %v152, 4
    %v154 = vmax.f32 %v152, %v153
    %v155 = vrot.slane %v154, 2
    %v156 = vmax.f32 %v154, %v155
    %v157 = vrot.slane %v156, 1
    %v158 = vmax.f32 %v156, %v157
    %159 = vst.msk [vmem:[%s1 + $0x7] sm:$0x1] %vm141, %v158
    %v160 = vsel %vm143, %v132, -inf
    %v161 = vrot.slane %v160, 4
    %v162 = vmax.f32 %v160, %v161
    %v163 = vrot.slane %v162, 2
    %v164 = vmax.f32 %v162, %v163
    %v165 = vrot.slane %v164, 1
    %v166 = vmax.f32 %v164, %v165
    %167 = vst.msk [vmem:[%s1 + $0x8] sm:$0x1] %vm141, %v166
    %v168 = vld [vmem:[#allocation2 + $0x40] sm:$0xff]
    %v169 = vld [vmem:[#allocation2 + $0x48] sm:$0xff]
    %v170 = vld [vmem:[#allocation2 + $0x50] sm:$0xff]
    %v171 = vld [vmem:[#allocation2 + $0x58] sm:$0xff]
    %v172 = vmax.f32 %v168, %v170
    %v173 = vmax.f32 %v169, %v171
    %v174 = vld [vmem:[#allocation2 + $0x60] sm:$0xff]
    %v175 = vld [vmem:[#allocation2 + $0x68] sm:$0xff]
    %v176 = vmax.f32 %v172, %v174
    %v177 = vmax.f32 %v173, %v175
    %v178 = vld [vmem:[#allocation2 + $0x70] sm:$0xff]
    %v179 = vld [vmem:[#allocation2 + $0x78] sm:$0xff]
    %v180 = vmax.f32 %v176, %v178
    %v181 = vmax.f32 %v177, %v179
    %v182 = vsel %vm133, %v180, -inf
    %v183 = vrot.slane %v182, 4
    %v184 = vmax.f32 %v182, %v183
    %v185 = vrot.slane %v184, 2
    %v186 = vmax.f32 %v184, %v185
    %v187 = vrot.slane %v186, 1
    %v188 = vmax.f32 %v186, %v187
    %189 = vst.msk [vmem:[%s1 + $0x9] sm:$0x1] %vm141, %v188
    %v190 = vsel %vm143, %v180, -inf
    %v191 = vrot.slane %v190, 4
    %v192 = vmax.f32 %v190, %v191
    %v193 = vrot.slane %v192, 2
    %v194 = vmax.f32 %v192, %v193
    %v195 = vrot.slane %v194, 1
    %v196 = vmax.f32 %v194, %v195
    %197 = vst.msk [vmem:[%s1 + $0xa] sm:$0x1] %vm141, %v196
    %v198 = vsel %vm133, %v181, -inf
    %v199 = vrot.slane %v198, 4
    %v200 = vmax.f32 %v198, %v199
    %v201 = vrot.slane %v200, 2
    %v202 = vmax.f32 %v200, %v201
    %v203 = vrot.slane %v202, 1
    %v204 = vmax.f32 %v202, %v203
    %205 = vst.msk [vmem:[%s1 + $0xb] sm:$0x1] %vm141, %v204
    %v206 = vsel %vm143, %v181, -inf
    %v207 = vrot.slane %v206, 4
    %v208 = vmax.f32 %v206, %v207
    %v209 = vrot.slane %v208, 2
    %v210 = vmax.f32 %v208, %v209
    %v211 = vrot.slane %v210, 1
    %v212 = vmax.f32 %v210, %v211
    %213 = vst.msk [vmem:[%s1 + $0xc] sm:$0x1] %vm141, %v212
    %v214 = vld [vmem:[#allocation2 + $0x80] sm:$0xff]
    %v215 = vld [vmem:[#allocation2 + $0x88] sm:$0xff]
    %v216 = vld [vmem:[#allocation2 + $0x90] sm:$0xff]
    %v217 = vld [vmem:[#allocation2 + $0x98] sm:$0xff]
    %v218 = vmax.f32 %v214, %v216
    %v219 = vmax.f32 %v215, %v217
    %v220 = vld [vmem:[#allocation2 + $0xa0] sm:$0xff]
    %v221 = vld [vmem:[#allocation2 + $0xa8] sm:$0xff]
    %v222 = vmax.f32 %v218, %v220
    %v223 = vmax.f32 %v219, %v221
    %v224 = vld [vmem:[#allocation2 + $0xb0] sm:$0xff]
    %v225 = vld [vmem:[#allocation2 + $0xb8] sm:$0xff]
    %v226 = vmax.f32 %v222, %v224
    %v227 = vmax.f32 %v223, %v225
    %v228 = vsel %vm133, %v226, -inf
    %v229 = vrot.slane %v228, 4
    %v230 = vmax.f32 %v228, %v229
    %v231 = vrot.slane %v230, 2
    %v232 = vmax.f32 %v230, %v231
    %v233 = vrot.slane %v232, 1
    %v234 = vmax.f32 %v232, %v233
    %235 = vst.msk [vmem:[%s1 + $0xd] sm:$0x1] %vm141, %v234
    %v236 = vsel %vm143, %v226, -inf
    %v237 = vrot.slane %v236, 4
    %v238 = vmax.f32 %v236, %v237
    %v239 = vrot.slane %v238, 2
    %v240 = vmax.f32 %v238, %v239
    %v241 = vrot.slane %v240, 1
    %v242 = vmax.f32 %v240, %v241
    %243 = vst.msk [vmem:[%s1 + $0xe] sm:$0x1] %vm141, %v242
    %v244 = vsel %vm133, %v227, -inf
    %v245 = vrot.slane %v244, 4
    %v246 = vmax.f32 %v244, %v245
    %v247 = vrot.slane %v246, 2
    %v248 = vmax.f32 %v246, %v247
    %v249 = vrot.slane %v248, 1
    %v250 = vmax.f32 %v248, %v249
    %251 = vst.msk [vmem:[%s1 + $0xf] sm:$0x1] %vm141, %v250
    %v252 = vsel %vm143, %v227, -inf
    %v253 = vrot.slane %v252, 4
    %v254 = vmax.f32 %v252, %v253
    %v255 = vrot.slane %v254, 2
    %v256 = vmax.f32 %v254, %v255
    %v257 = vrot.slane %v256, 1
    %v258 = vmax.f32 %v256, %v257
    %259 = vst.msk [vmem:[%s1 + $0x10] sm:$0x1] %vm141, %v258
    %v260 = vld [vmem:[#allocation2 + $0xc0] sm:$0xff]
    %v261 = vld [vmem:[#allocation2 + $0xc8] sm:$0xff]
    %v262 = vld [vmem:[#allocation2 + $0xd0] sm:$0xff]
    %v263 = vld [vmem:[#allocation2 + $0xd8] sm:$0xff]
    %v264 = vmax.f32 %v260, %v262
    %v265 = vmax.f32 %v261, %v263
    %v266 = vld [vmem:[#allocation2 + $0xe0] sm:$0xff]
    %v267 = vld [vmem:[#allocation2 + $0xe8] sm:$0xff]
    %v268 = vmax.f32 %v264, %v266
    %v269 = vmax.f32 %v265, %v267
    %v270 = vld [vmem:[#allocation2 + $0xf0] sm:$0xff]
    %v271 = vld [vmem:[#allocation2 + $0xf8] sm:$0xff]
    %v272 = vmax.f32 %v268, %v270
    %v273 = vmax.f32 %v269, %v271
    %v274 = vsel %vm133, %v272, -inf
    %v275 = vrot.slane %v274, 4
    %v276 = vmax.f32 %v274, %v275
    %v277 = vrot.slane %v276, 2
    %v278 = vmax.f32 %v276, %v277
    %v279 = vrot.slane %v278, 1
    %v280 = vmax.f32 %v278, %v279
    %281 = vst.msk [vmem:[%s1 + $0x11] sm:$0x1] %vm141, %v280
    %v282 = vsel %vm143, %v272, -inf
    %v283 = vrot.slane %v282, 4
    %v284 = vmax.f32 %v282, %v283
    %v285 = vrot.slane %v284, 2
    %v286 = vmax.f32 %v284, %v285
    %v287 = vrot.slane %v286, 1
    %v288 = vmax.f32 %v286, %v287
    %289 = vst.msk [vmem:[%s1 + $0x12] sm:$0x1] %vm141, %v288
    %v290 = vsel %vm133, %v273, -inf
    %v291 = vrot.slane %v290, 4
    %v292 = vmax.f32 %v290, %v291
    %v293 = vrot.slane %v292, 2
    %v294 = vmax.f32 %v292, %v293
    %v295 = vrot.slane %v294, 1
    %v296 = vmax.f32 %v294, %v295
    %297 = vst.msk [vmem:[%s1 + $0x13] sm:$0x1] %vm141, %v296
    %v298 = vsel %vm143, %v273, -inf
    %v299 = vrot.slane %v298, 4
    %v300 = vmax.f32 %v298, %v299
    %v301 = vrot.slane %v300, 2
    %v302 = vmax.f32 %v300, %v301
    %v303 = vrot.slane %v302, 1
    %v304 = vmax.f32 %v302, %v303
    %305 = vst.msk [vmem:[%s1 + $0x14] sm:$0x1] %vm141, %v304
    %v306 = vld [vmem:[%s1 + $0x5] sm:$0x1]
    %v307 = vld [vmem:[%s1 + $0x6] sm:$0x1]
    %v308 = vld [vmem:[%s1 + $0x7] sm:$0x1]
    %v309 = vld [vmem:[%s1 + $0x8] sm:$0x1]
    %v310 = vld [vmem:[%s1 + $0x9] sm:$0x1]
    %v311 = vld [vmem:[%s1 + $0xa] sm:$0x1]
    %v312 = vld [vmem:[%s1 + $0xb] sm:$0x1]
    %v313 = vld [vmem:[%s1 + $0xc] sm:$0x1]
    %v314 = vld [vmem:[%s1 + $0xd] sm:$0x1]
    %v315 = vld [vmem:[%s1 + $0xe] sm:$0x1]
    %v316 = vld [vmem:[%s1 + $0xf] sm:$0x1]
    %v317 = vld [vmem:[%s1 + $0x10] sm:$0x1]
    %v318 = vld [vmem:[%s1 + $0x11] sm:$0x1]
    %v319 = vld [vmem:[%s1 + $0x12] sm:$0x1]
    %v320 = vld [vmem:[%s1 + $0x13] sm:$0x1]
    %v321 = vld [vmem:[%s1 + $0x14] sm:$0x1]
    %v322 = vmax.f32 %v306, %v307
    %v323 = vmax.f32 %v322, %v308
    %v324 = vmax.f32 %v323, %v309
    %v325 = vmax.f32 %v324, %v310
    %v326 = vmax.f32 %v325, %v311
    %v327 = vmax.f32 %v326, %v312
    %v328 = vmax.f32 %v327, %v313
    %v329 = vmax.f32 %v328, %v314
    %v330 = vmax.f32 %v329, %v315
    %v331 = vmax.f32 %v330, %v316
    %v332 = vmax.f32 %v331, %v317
    %v333 = vmax.f32 %v332, %v318
    %v334 = vmax.f32 %v333, %v319
    %v335 = vmax.f32 %v334, %v320
    %v336 = vmax.f32 %v335, %v321
    %337 = vst.msk [vmem:[%s1] sm:$0x1] %vm141, %v336
    %v338 = vld [vmem:[%s1 + $0x5] sm:$0x1]
    %v339 = vld [vmem:[%s1 + $0x6] sm:$0x1]
    %v340 = vld [vmem:[%s1 + $0x9] sm:$0x1]
    %v341 = vld [vmem:[%s1 + $0xa] sm:$0x1]
    %v342 = vmax.f32 %v338, %v339
    %v343 = vmax.f32 %v342, %v340
    %v344 = vmax.f32 %v343, %v341
    %345 = vst.msk [vmem:[%s1 + $0x1] sm:$0x1] %vm141, %v344
    %v346 = vld [vmem:[%s1 + $0x7] sm:$0x1]
    %v347 = vld [vmem:[%s1 + $0x8] sm:$0x1]
    %v348 = vld [vmem:[%s1 + $0xb] sm:$0x1]
    %v349 = vld [vmem:[%s1 + $0xc] sm:$0x1]
    %v350 = vmax.f32 %v346, %v347
    %v351 = vmax.f32 %v350, %v348
    %v352 = vmax.f32 %v351, %v349
    %353 = vst.msk [vmem:[%s1 + $0x2] sm:$0x1] %vm141, %v352
    %v354 = vld [vmem:[%s1 + $0xd] sm:$0x1]
    %v355 = vld [vmem:[%s1 + $0xe] sm:$0x1]
    %v356 = vld [vmem:[%s1 + $0x11] sm:$0x1]
    %v357 = vld [vmem:[%s1 + $0x12] sm:$0x1]
    %v358 = vmax.f32 %v354, %v355
    %v359 = vmax.f32 %v358, %v356
    %v360 = vmax.f32 %v359, %v357
    %361 = vst.msk [vmem:[%s1 + $0x3] sm:$0x1] %vm141, %v360
    %v362 = vld [vmem:[%s1 + $0xf] sm:$0x1]
    %v363 = vld [vmem:[%s1 + $0x10] sm:$0x1]
    %v364 = vld [vmem:[%s1 + $0x13] sm:$0x1]
    %v365 = vld [vmem:[%s1 + $0x14] sm:$0x1]
    %v366 = vmax.f32 %v362, %v363
    %v367 = vmax.f32 %v366, %v364
    %v368 = vmax.f32 %v367, %v365
    %369 = vst.msk [vmem:[%s1 + $0x4] sm:$0x1] %vm141, %v368
    // Predicated region
    $region10: #{tpu_custom_call.1} parent=1 // pred_check
      _
    $region11: #{tpu_custom_call.1} parent=1 // pred_check_branch
      %371 = sbr.rel (0) target = $region13
    $region12: #{tpu_custom_call.1} parent=1 // pred_region
      _
    $region13: #{tpu_custom_call.1} parent=1 // pred_fallthru
      _
    // Predicated region
    $region14: #{tpu_custom_call.1} parent=1 // pred_check
      _
    $region15: #{tpu_custom_call.1} parent=1 // pred_check_branch
      %373 = sbr.rel (0) target = $region17
    $region16: #{tpu_custom_call.1} parent=1 // pred_region
      _
    $region17: #{tpu_custom_call.1} parent=1 // pred_fallthru
      _
    %374 = vsyncpa [#allocation4], 1

</llo_original>
